<compile_context>
chip_gen: v5e
topology: v5e:2x2
jax: 0.10.0
libtpu: 0.0.40
codegen_flags: <defaults>
</compile_context>

<pallas_src>
import functools

import jax
import jax.numpy as jnp
import numpy as np
from jax.experimental import pallas as pl
from jax.experimental.pallas import tpu as pltpu


def _round_up(x, m):
    return ((x + m - 1) // m) * m


# ----------------------------------------------------------------------------
# Kernel: one (TM, TN) tile of the pairwise radius test.
#   q_ref  : (TM, D)  query coordinates
#   pt_ref : (D, TN)  point coordinates, transposed (tile matmul is plain NN)
#   qn_ref : (TM, 1)  ||q||^2
#   pn_ref : (1, TN)  ||p||^2  (padded point columns carry +1e30 -> never match)
# Outputs:
#   mask_ref : (TM, TN) int32  1 where dist <= radius   (lane-dense store)
#   cnt_ref  : (TM, 1)  int32  per-query count, accumulated over the j axis
# ----------------------------------------------------------------------------
def _neighbor_mask_kernel(q_ref, pt_ref, qn_ref, pn_ref, mask_ref, cnt_ref, *, r2):
    gram = jnp.dot(q_ref[...], pt_ref[...], preferred_element_type=jnp.float32)
    d2 = qn_ref[...] + pn_ref[...] - 2.0 * gram              # (TM, TN)
    m = (d2 <= r2).astype(jnp.int32)
    mask_ref[...] = m

    @pl.when(pl.program_id(1) == 0)
    def _():
        cnt_ref[...] = jnp.zeros_like(cnt_ref)

    cnt_ref[...] += jnp.sum(m, axis=1, keepdims=True)


def neighbor_mask_counts(points, queries, radius, *, tile_m=256, tile_n=512):
    """Dense radius test. Returns (mask [M, N] int32, counts [M] int32)."""
    M, D = queries.shape
    N, D2 = points.shape
    assert D == D2
    r2 = float(radius) * float(radius)

    TM = min(tile_m, _round_up(M, 8))
    TN = min(tile_n, _round_up(N, 128))
    M_pad = _round_up(M, TM)
    N_pad = _round_up(N, TN)

    q = jnp.pad(queries.astype(jnp.float32), ((0, M_pad - M), (0, 0)))
    p = jnp.pad(points.astype(jnp.float32), ((0, N_pad - N), (0, 0)))
    qn = jnp.sum(q * q, axis=1, keepdims=True)                         # [M_pad, 1]
    pn = jnp.sum(p * p, axis=1)                                        # [N_pad]
    pn = jnp.where(jnp.arange(N_pad) < N, pn, jnp.float32(1e30))[None, :]
    pt = p.T                                                           # [D, N_pad]

    kernel = functools.partial(_neighbor_mask_kernel, r2=r2)
    mask, cnt = pl.pallas_call(
        kernel,
        out_shape=(jax.ShapeDtypeStruct((M_pad, N_pad), jnp.int32),
                   jax.ShapeDtypeStruct((M_pad, 1), jnp.int32)),
        grid_spec=pltpu.PrefetchScalarGridSpec(
            num_scalar_prefetch=0,
            grid=(M_pad // TM, N_pad // TN),           # reduction (N) axis last
            in_specs=[
                pl.BlockSpec((TM, D), lambda i, j: (i, 0)),
                pl.BlockSpec((D, TN), lambda i, j: (0, j)),
                pl.BlockSpec((TM, 1), lambda i, j: (i, 0)),
                pl.BlockSpec((1, TN), lambda i, j: (0, j)),
            ],
            out_specs=[
                pl.BlockSpec((TM, TN), lambda i, j: (i, j)),
                pl.BlockSpec((TM, 1), lambda i, j: (i, 0)),
            ],
        ),
        compiler_params=pltpu.CompilerParams(
            dimension_semantics=("parallel", "arbitrary")),
    )(q, pt, qn, pn)
    return mask[:M, :N], cnt[:M, 0]


def neighbor_search(points, queries, radius):
    """Mirrors NeighborSearchLayer.forward: returns (neighbors_index, row_splits)."""
    mask, counts = neighbor_mask_counts(points, queries, radius)
    N = points.shape[0]
    row_splits = jnp.concatenate(
        [jnp.zeros((1,), counts.dtype), jnp.cumsum(counts)])
    # TODO(synk): torch returns int64 row_splits; with JAX default x64 disabled this stays int32.
    # Dynamic-length pair compaction (torch.where): data-dependent output size,
    # done eagerly on the kernel-produced mask (row-major order == torch.where).
    flat_nz = jnp.flatnonzero(mask)
    neighbors_index = (flat_nz % N).astype(jnp.int32)
    return neighbors_index, row_splits


if __name__ == "__main__":
    key = jax.random.PRNGKey(0)
    kp, kq = jax.random.split(key)

    N, M, D = 64, 16, 3
    radius = 0.4
    # Coordinates quantized to multiples of 1/8 so all squared distances are
    # exact multiples of 1/64 and never sit on the radius boundary (r^2=0.16):
    # Gram-matrix formula and direct formula then agree bit-exactly.
    points = jax.random.randint(kp, (N, D), 0, 9).astype(jnp.float32) / 8.0
    queries = jax.random.randint(kq, (M, D), 0, 9).astype(jnp.float32) / 8.0

    nbr_idx, row_splits = neighbor_search(points, queries, radius)
    nbr_idx, row_splits = jax.block_until_ready((nbr_idx, row_splits))

    # Pure-JAX reference mirroring torch.cdist + torch.where semantics.
    d = jnp.sqrt(jnp.sum((queries[:, None, :] - points[None, :, :]) ** 2, axis=-1))
    ref_mask = d <= radius
    ref_counts = ref_mask.sum(axis=1).astype(jnp.int32)
    ref_splits = jnp.concatenate(
        [jnp.zeros((1,), jnp.int32), jnp.cumsum(ref_counts)])
    ref_idx = (jnp.flatnonzero(ref_mask) % N).astype(jnp.int32)

    assert row_splits.shape == (M + 1,)
    np.testing.assert_array_equal(np.asarray(row_splits), np.asarray(ref_splits))
    np.testing.assert_array_equal(np.asarray(nbr_idx), np.asarray(ref_idx))
    assert int(row_splits[-1]) == nbr_idx.shape[0]
    print("KERNEL_OK")
</pallas_src>

<mosaic_0001>
module attributes {stable_mosaic.version = 11 : i64} {
  func.func @_neighbor_mask_kernel(%arg0: i32, %arg1: i32, %arg2: memref<16x3xf32, #tpu.memory_space<vmem>>, %arg3: memref<3x128xf32, #tpu.memory_space<vmem>>, %arg4: memref<16x1xf32, #tpu.memory_space<vmem>>, %arg5: memref<1x128xf32, #tpu.memory_space<vmem>>, %arg6: memref<16x128xi32, #tpu.memory_space<vmem>>, %arg7: memref<16x1xi32, #tpu.memory_space<vmem>>) attributes {dimension_semantics = [#tpu.dimension_semantics<parallel>, #tpu.dimension_semantics<arbitrary>], iteration_bounds = array<i64: 1, 1>, scalar_prefetch = 0 : i64, scratch_operands = 0 : i64, tpu.core_type = #tpu.core_type<tc>, window_params = [{transform_indices = @transform_0, window_bounds = array<i64: 16, 3>}, {transform_indices = @transform_1, window_bounds = array<i64: 3, 128>}, {transform_indices = @transform_2, window_bounds = array<i64: 16, 1>}, {transform_indices = @transform_3, window_bounds = array<i64: 1, 128>}, {transform_indices = @transform_4, window_bounds = array<i64: 16, 128>}, {transform_indices = @transform_5, window_bounds = array<i64: 16, 1>}]} {
    %c0 = arith.constant 0 : index
    %c0_0 = arith.constant 0 : index
    %0 = vector.load %arg2[%c0, %c0_0] : memref<16x3xf32, #tpu.memory_space<vmem>>, vector<16x3xf32>
    %c0_1 = arith.constant 0 : index
    %c0_2 = arith.constant 0 : index
    %1 = vector.load %arg3[%c0_1, %c0_2] : memref<3x128xf32, #tpu.memory_space<vmem>>, vector<3x128xf32>
    %cst = arith.constant dense<0.000000e+00> : vector<16x128xf32>
    %2 = tpu.matmul %0, %1, %cst {dimension_numbers = #tpu.dot_dimension_numbers<[1], [0], [0], [1], [0, 0, 1, 1], [], []>} : vector<16x3xf32>, vector<3x128xf32>, vector<16x128xf32> -> vector<16x128xf32>
    %c0_3 = arith.constant 0 : index
    %c0_4 = arith.constant 0 : index
    %3 = vector.load %arg4[%c0_3, %c0_4] : memref<16x1xf32, #tpu.memory_space<vmem>>, vector<16x1xf32>
    %c0_5 = arith.constant 0 : index
    %c0_6 = arith.constant 0 : index
    %4 = vector.load %arg5[%c0_5, %c0_6] : memref<1x128xf32, #tpu.memory_space<vmem>>, vector<1x128xf32>
    %5 = vector.broadcast %3 : vector<16x1xf32> to vector<16x128xf32>
    %6 = vector.broadcast %4 : vector<1x128xf32> to vector<16x128xf32>
    %7 = arith.addf %5, %6 : vector<16x128xf32>
    %cst_7 = arith.constant 2.000000e+00 : f32
    %8 = vector.broadcast %cst_7 : f32 to vector<16x128xf32>
    %9 = arith.mulf %8, %2 : vector<16x128xf32>
    %10 = arith.subf %7, %9 : vector<16x128xf32>
    %cst_8 = arith.constant 1.600000e-01 : f32
    %11 = vector.broadcast %cst_8 : f32 to vector<16x128xf32>
    %12 = arith.cmpf ole, %10, %11 : vector<16x128xf32>
    %13 = arith.extui %12 : vector<16x128xi1> to vector<16x128xi32>
    %c0_9 = arith.constant 0 : index
    %c0_10 = arith.constant 0 : index
    %14 = vector.load %arg6[%c0_9, %c0_10] : memref<16x128xi32, #tpu.memory_space<vmem>>, vector<16x128xi32>
    tpu.vector_store %arg6[%c0_9, %c0_10], %13 {strides = array<i32>} : memref<16x128xi32, #tpu.memory_space<vmem>>, vector<16x128xi32>,
    %c0_i32 = arith.constant 0 : i32
    %15 = arith.cmpi eq, %arg1, %c0_i32 : i32
    %16 = arith.extui %15 : i1 to i32
    %c0_i32_11 = arith.constant 0 : i32
    %17 = arith.cmpi ne, %16, %c0_i32_11 : i32
    scf.if %17 {
      %c0_i32_17 = arith.constant 0 : i32
      %23 = vector.broadcast %c0_i32_17 : i32 to vector<16x1xi32>
      %c0_18 = arith.constant 0 : index
      %c0_19 = arith.constant 0 : index
      %24 = vector.load %arg7[%c0_18, %c0_19] : memref<16x1xi32, #tpu.memory_space<vmem>>, vector<16x1xi32>
      tpu.vector_store %arg7[%c0_18, %c0_19], %23 {strides = array<i32>} : memref<16x1xi32, #tpu.memory_space<vmem>>, vector<16x1xi32>,
    } else {
    }
    %c0_12 = arith.constant 0 : index
    %c0_13 = arith.constant 0 : index
    %18 = vector.load %arg7[%c0_12, %c0_13] : memref<16x1xi32, #tpu.memory_space<vmem>>, vector<16x1xi32>
    %cst_14 = arith.constant dense<0> : vector<16xi32>
    %19 = vector.multi_reduction <add>, %13, %cst_14 [1] : vector<16x128xi32> to vector<16xi32>
    %20 = vector.shape_cast %19 : vector<16xi32> to vector<16x1xi32>
    %21 = arith.addi %18, %20 : vector<16x1xi32>
    %c0_15 = arith.constant 0 : index
    %c0_16 = arith.constant 0 : index
    %22 = vector.load %arg7[%c0_15, %c0_16] : memref<16x1xi32, #tpu.memory_space<vmem>>, vector<16x1xi32>
    tpu.vector_store %arg7[%c0_15, %c0_16], %21 {strides = array<i32>} : memref<16x1xi32, #tpu.memory_space<vmem>>, vector<16x1xi32>,
    return
  }
  func.func @transform_0(%arg0: i32, %arg1: i32) -> (i32, i32) {
    %c0_i32 = arith.constant 0 : i32
    %c0_i32_0 = arith.constant 0 : i32
    return %arg0, %c0_i32 : i32, i32
  }
  func.func @transform_1(%arg0: i32, %arg1: i32) -> (i32, i32) {
    %c0_i32 = arith.constant 0 : i32
    %c0_i32_0 = arith.constant 0 : i32
    return %c0_i32, %arg1 : i32, i32
  }
  func.func @transform_2(%arg0: i32, %arg1: i32) -> (i32, i32) {
    %c0_i32 = arith.constant 0 : i32
    %c0_i32_0 = arith.constant 0 : i32
    return %arg0, %c0_i32 : i32, i32
  }
  func.func @transform_3(%arg0: i32, %arg1: i32) -> (i32, i32) {
    %c0_i32 = arith.constant 0 : i32
    %c0_i32_0 = arith.constant 0 : i32
    return %c0_i32, %arg1 : i32, i32
  }
  func.func @transform_4(%arg0: i32, %arg1: i32) -> (i32, i32) {
    %c0_i32 = arith.constant 0 : i32
    return %arg0, %arg1 : i32, i32
  }
  func.func @transform_5(%arg0: i32, %arg1: i32) -> (i32, i32) {
    %c0_i32 = arith.constant 0 : i32
    %c0_i32_0 = arith.constant 0 : i32
    return %arg0, %c0_i32 : i32, i32
  }
}

</mosaic_0001>

<llo_original>
// kernel: tpu_custom_call.1
$region0: #{tpu_custom_call.1}
  #allocation0 [shape = 'u32[]', space=smem, size = 0x4, offset = 0x4, fixed_abs, tag = 'smem constant byte address 0x4 - core index']
  #allocation1 [shape = 'u32[72,128]{1,0:T(1,128)}', space=vmem, size = 0x9000, scoped, tag = 'internal scratch']
  %s0 = inlined_call_operand.vmem [shape: f32[16,3], index: 0, kind: input, shape index: {}]
  %s1 = inlined_call_operand.vmem [shape: f32[3,128], index: 1, kind: input, shape index: {}]
  %s2 = inlined_call_operand.vmem [shape: f32[16,1], index: 2, kind: input, shape index: {}]
  %s3 = inlined_call_operand.vmem [shape: f32[1,128], index: 3, kind: input, shape index: {}]
  %s4 = inlined_call_operand.hbm [shape: s32[16,128], index: 4, kind: output, shape index: {0}]
  %s5 = inlined_call_operand.vmem [shape: s32[16,1], index: 5, kind: output, shape index: {1}]
  %6 = xla_tuple %s4, %s5
  %s7 = sld [smem:[#allocation0]]
  $region38: #{tpu_custom_call.1} parent=0
    _
  %s9 = ssub.s32 1, %s7
  %s10 = scalar_select 0, %s9, %s7
  $region1: #{tpu_custom_call.1} parent=0
    #allocation2 [shape = 'u8[8192]{0}', space=vmem, size = 0x2000, scoped, tag = 'output window, operand 0, single buffered']
    #allocation3 [shape = 's32[1]{0}', space=sflag, size = 0x4, scoped, tag = 'scoped memory for tpu_custom_call.1']
    %11 = vsyncpa [#allocation3], 0
    // Predicated region
    $region2: #{tpu_custom_call.1} parent=1 // pred_check
      _
    $region3: #{tpu_custom_call.1} parent=1 // pred_check_branch
      %13 = sbr.rel (0) target = $region5
    $region4: #{tpu_custom_call.1} parent=1 // pred_region
      _
    $region5: #{tpu_custom_call.1} parent=1 // pred_fallthru
      _
    // Predicated region
    $region6: #{tpu_custom_call.1} parent=1 // pred_check
      _
    $region7: #{tpu_custom_call.1} parent=1 // pred_check_branch
      %15 = sbr.rel (0) target = $region9
    $region8: #{tpu_custom_call.1} parent=1 // pred_region
      _
    $region9: #{tpu_custom_call.1} parent=1 // pred_fallthru
      _
    // Predicated region
    $region10: #{tpu_custom_call.1} parent=1 // pred_check
      _
    $region11: #{tpu_custom_call.1} parent=1 // pred_check_branch
      %17 = sbr.rel (0) target = $region13
    $region12: #{tpu_custom_call.1} parent=1 // pred_region
      _
    $region13: #{tpu_custom_call.1} parent=1 // pred_fallthru
      _
    // Predicated region
    $region14: #{tpu_custom_call.1} parent=1 // pred_check
      _
    $region15: #{tpu_custom_call.1} parent=1 // pred_check_branch
      %19 = sbr.rel (0) target = $region17
    $region16: #{tpu_custom_call.1} parent=1 // pred_region
      _
    $region17: #{tpu_custom_call.1} parent=1 // pred_fallthru
      _
    %v20 = vld [vmem:[%s0] sm:$0xff]
    %v21 = vld [vmem:[%s0 + $0x8] sm:$0xff]
    %v22 = vld [vmem:[%s1] sm:$0x7]
    %vm23 = vcmask 23552
    %v25 = vsel %vm23, %v20, 0
    %v28 = vsel %vm23, %v21, 0
    %vm30 = vcmask 1042432
    %v32 = vsel %vm30, %v22, 0
    %34 = vmatpush.msra.mxu0 0.0
    %35 = vmatpush.msra.mxu0 0.0
    %36 = vmatpush.msra.mxu0 0.0
    %37 = vmatpush.msra.mxu0 0.0
    %38 = vmatpush.msra.mxu0 0.0
    %39 = vmatpush.msra.mxu0 0.0
    %40 = vmatpush.msra.mxu0 0.0
    %41 = vmatpush.msra.mxu0 0.0
    %42 = vmatpush.msra.mxu0 0.0
    %43 = vmatpush.msra.mxu0 0.0
    %44 = vmatpush.msra.mxu0 0.0
    %45 = vmatpush.msra.mxu0 0.0
    %46 = vmatpush.msra.mxu0 0.0
    %47 = vmatpush.msra.mxu0 0.0
    %48 = vmatpush.msra.mxu0 0.0
    %49 = vmatpush.msra.mxu0 %v32
    %50 = vmatmul.f32.gmra.mxu0 %v25
    %v51 = vpop.f32.mrf.mxu0
    %v52 = vadd.f32 0.0, %v51
    %53 = vmatmul.f32.gmra.mxu0 %v28
    %v54 = vpop.f32.mrf.mxu0
    %v55 = vadd.f32 0.0, %v54
    %56 = vdwg.mxu0
    %v57 = vld [vmem:[%s2] sm:$0xff]
    %v58 = vld [vmem:[%s2 + $0x8] sm:$0xff]
    %v59 = vld [vmem:[%s3] sm:$0x1]
    %61 = vset.pattern.permute.xlu0 0
    %62 = vperm.xlu0 %61, %v57
    %v63 = vpop.permute.xlu0 %62
    %66 = vset.pattern.permute.xlu0 0
    %67 = vperm.xlu0 %66, %v58
    %v68 = vpop.permute.xlu0 %67
    %v71 = vperm.slane %v59, 0
    %v73 = vadd.f32 %v63, %v71
    %v74 = vadd.f32 %v68, %v71
    %v75 = vmul.f32 %v52, 2.0
    %v76 = vmul.f32 %v55, 2.0
    %v77 = vsub.f32 %v73, %v75
    %v78 = vsub.f32 %v74, %v76
    %vm79 = vcmp.le.f32.partialorder %v77, 0.16
    %vm80 = vcmp.le.f32.partialorder %v78, 0.16
    %v81 = vsel %vm79, 1, 0
    %v82 = vsel %vm80, 1, 0
    %83 = vst [vmem:[#allocation2] sm:$0xff] %v81
    %84 = vst [vmem:[#allocation2 + $0x8] sm:$0xff] %v82
    %p85 = scmp.eq.s32.totalorder 0, 0
    // Predicated region
    $region18: #{tpu_custom_call.1} parent=1 // pred_check
      %p86 = pneg %p85
    $region19: #{tpu_custom_call.1} parent=1 // pred_check_branch
      %88 = sbr.rel (%p86) target = $region21
    $region20: #{tpu_custom_call.1} parent=1 // pred_region
      %vm89 = vcmask 7168
      %90 = vst.msk [vmem:[%s5] sm:$0xff] %vm89, 0
      %91 = vst.msk [vmem:[%s5 + $0x8] sm:$0xff] %vm89, 0
    $region21: #{tpu_custom_call.1} parent=1 // pred_fallthru
      _
    %v92 = vld [vmem:[%s5] sm:$0xff]
    %v93 = vld [vmem:[%s5 + $0x8] sm:$0xff]
    %v94 = vand.u32 %v81, 65535
    %v95 = vshrl.u32 %v81, 16
    %v96 = vcvt.s32.f32 %v94
    %v97 = vcvt.s32.f32 %v95
    %98 = vadd.xlane.f32.xlu0 %v96
    %v99 = vpop.xlane.xlu0 %98
    %100 = vadd.xlane.f32.xlu0 %v97
    %v101 = vpop.xlane.xlu0 %100
    %v102 = vcvt.f32.s32 %v99
    %v103 = vcvt.f32.s32 %v101
    %v104 = vshll.u32 %v103, 16
    %v105 = vadd.s32 %v104, %v102
    %v106 = vand.u32 %v82, 65535
    %v107 = vshrl.u32 %v82, 16
    %v108 = vcvt.s32.f32 %v106
    %v109 = vcvt.s32.f32 %v107
    %110 = vadd.xlane.f32.xlu0 %v108
    %v111 = vpop.xlane.xlu0 %110
    %112 = vadd.xlane.f32.xlu0 %v109
    %v113 = vpop.xlane.xlu0 %112
    %v114 = vcvt.f32.s32 %v111
    %v115 = vcvt.f32.s32 %v113
    %v116 = vshll.u32 %v115, 16
    %v117 = vadd.s32 %v116, %v114
    %v118 = vadd.s32 %v92, %v105
    %v119 = vadd.s32 %v93, %v117
    %vm120 = vcmask 7168
    %121 = vst.msk [vmem:[%s5] sm:$0xff] %vm120, %v118
    %122 = vst.msk [vmem:[%s5 + $0x8] sm:$0xff] %vm120, %v119
    // Predicated region
    $region22: #{tpu_custom_call.1} parent=1 // pred_check
      _
    $region23: #{tpu_custom_call.1} parent=1 // pred_check_branch
      %124 = sbr.rel (0) target = $region25
    $region24: #{tpu_custom_call.1} parent=1 // pred_region
      %126 = vsyncadd [#allocation3], 0
      %s127 = sshll.u32 [#allocation2], 4
      %s128 = int_to_ptr.vmem [resolvable:$true] %s127
      %s129 = sshll.u32 %s4, 4
      %s130 = int_to_ptr.hbm [resolvable:$true] %s129
      %135 = dma.vmem_to_hbm [thread:$0]  %s128, 256, %s130, [#allocation3], 128, 128, 8
    $region25: #{tpu_custom_call.1} parent=1 // pred_fallthru
      _
    // Predicated region
    $region26: #{tpu_custom_call.1} parent=1 // pred_check
      _
    $region27: #{tpu_custom_call.1} parent=1 // pred_check_branch
      %137 = sbr.rel (0) target = $region29
    $region28: #{tpu_custom_call.1} parent=1 // pred_region
      _
    $region29: #{tpu_custom_call.1} parent=1 // pred_fallthru
      _
    // Predicated region
    $region30: #{tpu_custom_call.1} parent=1 // pred_check
      _
    $region31: #{tpu_custom_call.1} parent=1 // pred_check_branch
      %139 = sbr.rel (0) target = $region33
    $region32: #{tpu_custom_call.1} parent=1 // pred_region
      %141 = dma.done [#allocation3], 256
    $region33: #{tpu_custom_call.1} parent=1 // pred_fallthru
      _
    // Predicated region
    $region34: #{tpu_custom_call.1} parent=1 // pred_check
      _
    $region35: #{tpu_custom_call.1} parent=1 // pred_check_branch
      %143 = sbr.rel (0) target = $region37
    $region36: #{tpu_custom_call.1} parent=1 // pred_region
      _
    $region37: #{tpu_custom_call.1} parent=1 // pred_fallthru
      _
    %144 = vsyncpa [#allocation3], 1

</llo_original>
